<compile_context>
chip_gen: v5e
topology: v5e:2x2
jax: 0.10.0
libtpu: 0.0.40
codegen_flags: <defaults>
</compile_context>

<pallas_src>
import jax
import jax.numpy as jnp
from jax.experimental import pallas as pl
from jax.experimental.pallas import tpu as pltpu


def _channel_attention_kernel(x_ref, w1_ref, b1_ref, w2_ref, b2_ref,
                              wp_ref, bp_ref, o_ref):
    # x_ref block: (TB, N, C); o_ref block: (TB*N, O); weights: full-extent.
    TB, N, C = x_ref.shape
    H = w1_ref.shape[0]

    x = x_ref[...]                                            # input dtype

    # ---- AdaptiveAvgPool1d(1): mean over the sequence axis (tiny, f32) ---- #
    mean = jnp.mean(x.astype(jnp.float32), axis=1)            # (TB, C)

    # ---- Squeeze-excite MLP ----------------------------------------------- #
    if H < 8:
        # Tiny hidden dim: broadcast-multiply + lane reductions on the VPU/XLU,
        # keeping the MXU free for the real projection matmul.
        acc = jnp.zeros((TB, C), jnp.float32)
        for j in range(H):                                    # static tiny loop
            hj = jnp.sum(mean * w1_ref[j:j + 1, :], axis=1, keepdims=True)
            hj = jnp.maximum(hj + b1_ref[0:1, j:j + 1], 0.0)  # (TB, 1)
            acc = acc + hj * w2_ref[j:j + 1, :]               # (TB, C)
        cw = jax.nn.sigmoid(acc + b2_ref[...])                # (TB, C)
    else:
        # Larger hidden dim: two small matmuls (the MXU has slack here; the
        # XLU would not, so avoid H serialized cross-lane reductions).
        h = jax.lax.dot_general(mean, w1_ref[...],
                                (((1,), (1,)), ((), ())),
                                preferred_element_type=jnp.float32)   # (TB, H)
        h = jnp.maximum(h + b1_ref[...], 0.0)
        cw = jax.nn.sigmoid(
            jnp.dot(h, w2_ref[...], preferred_element_type=jnp.float32)
            + b2_ref[...])                                    # (TB, C)

    # ---- Channel reweighting + projection ---------------------------------- #
    # The reweighted operand stays in the input dtype (no full-tile f32 copy);
    # the flatten is layout-preserving because the wrapper guarantees
    # N % 8 == 0 or a single full-batch block.
    weighted = x * cw.astype(x.dtype)[:, None, :]             # (TB, N, C)
    proj_in = weighted.reshape(TB * N, C)
    out = jnp.dot(proj_in, wp_ref[...],
                  preferred_element_type=jnp.float32) + bp_ref[...]
    o_ref[...] = out.astype(o_ref.dtype)                      # (TB*N, O)


def _choose_batch_tile(B, N, C, O, in_itemsize, out_itemsize,
                       budget_bytes=48 * 1024 * 1024):
    """Pick the batch tile TB (must divide B).

    Accounts for the double-buffered in/out blocks plus the f32 projection
    accumulator and the reweighted operand, prefers >= 2 grid steps so v7x's
    two TensorCores both get work, and keeps the in-kernel (TB, N, C) ->
    (TB*N, C) flatten layout-preserving.
    """
    per_batch = N * (2 * C * in_itemsize        # x block, double-buffered
                     + 2 * O * out_itemsize     # out block, double-buffered
                     + O * 4                    # f32 projection accumulator
                     + C * in_itemsize)         # reweighted operand
    tb = max(1, min(B, budget_bytes // max(per_batch, 1)))
    if B >= 2:
        tb = min(tb, B // 2)                    # keep >= 2 grid steps (v7x)
    tb = max(tb, 1)
    while tb > 1 and B % tb != 0:
        tb -= 1
    if N % 8 != 0 and tb != B:
        # A partial batch tile would need a non-sublane-aligned flattened
        # output block; fall back to one full-extent block (always legal).
        # TODO(synk): add an N-tiling path for long sequences / v7x's 64 MiB.
        tb = B
    return tb


def pack_channel_attention_params(fc1_w, fc1_b, fc2_w, fc2_b, proj_w, proj_b):
    """One-time repack of PyTorch-layout weights into kernel layouts.

    fc1_w: (H, C), fc1_b: (H,), fc2_w: (C, H), fc2_b: (C,),
    proj_w: (O, C), proj_b: (O,).
    """
    H, C = fc1_w.shape
    O = proj_w.shape[0]
    return dict(
        w1=fc1_w,                       # (H, C)
        b1=fc1_b.reshape(1, H),         # (1, H)
        w2=fc2_w.T,                     # (H, C)
        b2=fc2_b.reshape(1, C),         # (1, C)
        wp=proj_w.T,                    # (C, O)
        bp=proj_b.reshape(1, O),        # (1, O)
    )


def channel_attention(x, params):
    """x: (B, N, C); params: output of pack_channel_attention_params."""
    B, N, C = x.shape
    w1, b1, w2, b2, wp, bp = (params["w1"], params["b1"], params["w2"],
                              params["b2"], params["wp"], params["bp"])
    H = w1.shape[0]
    O = wp.shape[1]

    out_dtype = x.dtype
    in_itemsize = x.dtype.itemsize
    out_itemsize = jnp.dtype(out_dtype).itemsize

    TB = _choose_batch_tile(B, N, C, O, in_itemsize, out_itemsize)
    grid = (B // TB,)

    weight_bytes = sum(int(a.size) * a.dtype.itemsize
                       for a in (w1, b1, w2, b2, wp, bp))
    cost = pl.CostEstimate(
        flops=int(2 * B * N * C * O + 2 * B * N * C + 4 * B * C * H),
        transcendentals=int(B * C),
        bytes_accessed=int(B * N * C * in_itemsize
                           + B * N * O * out_itemsize + weight_bytes),
    )

    # VMEM needed per grid step (double-buffered blocks + f32 temporaries +
    # resident weights), with headroom; clamped to a range that is safe on
    # v5e/v6e (128 MiB physical) and v7x (64 MiB physical).
    per_step = (2 * TB * N * C * in_itemsize
                + 2 * TB * N * O * out_itemsize
                + TB * N * (O * 4 + C * in_itemsize)
                + weight_bytes)
    vmem_limit = int(min(48 * 1024 * 1024,
                         max(32 * 1024 * 1024, 2 * per_step)))

    grid_spec = pltpu.PrefetchScalarGridSpec(
        num_scalar_prefetch=0,
        grid=grid,
        in_specs=[
            pl.BlockSpec((TB, N, C), lambda b: (b, 0, 0)),
            pl.BlockSpec((H, C), lambda b: (0, 0)),
            pl.BlockSpec((1, H), lambda b: (0, 0)),
            pl.BlockSpec((H, C), lambda b: (0, 0)),
            pl.BlockSpec((1, C), lambda b: (0, 0)),
            pl.BlockSpec((C, O), lambda b: (0, 0)),
            pl.BlockSpec((1, O), lambda b: (0, 0)),
        ],
        # Unpadded output slab: last dim is the true O (full-extent block dim).
        out_specs=pl.BlockSpec((TB * N, O), lambda b: (b, 0)),
    )

    out_flat = pl.pallas_call(
        _channel_attention_kernel,
        out_shape=jax.ShapeDtypeStruct((B * N, O), out_dtype),
        grid_spec=grid_spec,
        compiler_params=pltpu.CompilerParams(
            dimension_semantics=("parallel",),
            vmem_limit_bytes=vmem_limit,
        ),
        cost_estimate=cost,
    )(x, w1, b1, w2, b2, wp, bp)

    # (B*N, O) -> (B, N, O) is a pure metadata reshape (no HBM traffic).
    return out_flat.reshape(B, N, O)


def reference(x, fc1_w, fc1_b, fc2_w, fc2_b, proj_w, proj_b):
    """Pure-JAX reference mirroring the PyTorch forward (PyTorch weight layout)."""
    cw = jnp.mean(x, axis=1)                                  # (B, C)
    cw = jnp.maximum(cw @ fc1_w.T + fc1_b, 0.0)               # (B, H)
    cw = jax.nn.sigmoid(cw @ fc2_w.T + fc2_b)                 # (B, C)
    weighted = x * cw[:, None, :]                             # (B, N, C)
    return weighted @ proj_w.T + proj_b                       # (B, N, O)


if __name__ == "__main__":
    # Module config: in_channels=32, out_channels=32, reduction_ratio=16 -> H=2
    B, N, C = 2, 8, 32
    R = 16
    H = C // R
    O = 32

    key = jax.random.PRNGKey(0)
    kx, k1, kb1, k2, kb2, kp, kbp = jax.random.split(key, 7)

    x = jax.random.normal(kx, (B, N, C), dtype=jnp.float32)

    # PyTorch-layout (out_features, in_features) parameters.
    fc1_w = jax.random.normal(k1, (H, C), dtype=jnp.float32) * 0.1
    fc1_b = jax.random.normal(kb1, (H,), dtype=jnp.float32) * 0.1
    fc2_w = jax.random.normal(k2, (C, H), dtype=jnp.float32) * 0.1
    fc2_b = jax.random.normal(kb2, (C,), dtype=jnp.float32) * 0.1
    proj_w = jax.random.normal(kp, (O, C), dtype=jnp.float32) * 0.1
    proj_b = jax.random.normal(kbp, (O,), dtype=jnp.float32) * 0.1

    # Pack weights once (hoisted out of the call path).
    params = pack_channel_attention_params(fc1_w, fc1_b, fc2_w, fc2_b,
                                           proj_w, proj_b)

    out = channel_attention(x, params)
    out = jax.block_until_ready(out)

    ref = reference(x, fc1_w, fc1_b, fc2_w, fc2_b, proj_w, proj_b)
    assert out.shape == (B, N, O), out.shape
    assert jnp.allclose(out, ref, atol=1e-5, rtol=1e-5), "mismatch vs reference"

    print("KERNEL_OK")
</pallas_src>

<mosaic_0001>
module attributes {stable_mosaic.version = 11 : i64} {
  func.func @_channel_attention_kernel(%arg0: i32, %arg1: memref<1x8x32xf32, #tpu.memory_space<vmem>>, %arg2: memref<2x32xf32, #tpu.memory_space<vmem>>, %arg3: memref<1x2xf32, #tpu.memory_space<vmem>>, %arg4: memref<2x32xf32, #tpu.memory_space<vmem>>, %arg5: memref<1x32xf32, #tpu.memory_space<vmem>>, %arg6: memref<32x32xf32, #tpu.memory_space<vmem>>, %arg7: memref<1x32xf32, #tpu.memory_space<vmem>>, %arg8: memref<8x32xf32, #tpu.memory_space<vmem>>) attributes {dimension_semantics = [#tpu.dimension_semantics<parallel>], iteration_bounds = array<i64: 2>, scalar_prefetch = 0 : i64, scratch_operands = 0 : i64, tpu.core_type = #tpu.core_type<tc>, window_params = [{transform_indices = @transform_0, window_bounds = array<i64: 1, 8, 32>}, {pipeline_mode = #tpu.pipeline_mode<synchronous>, transform_indices = @transform_1, window_bounds = array<i64: 2, 32>}, {pipeline_mode = #tpu.pipeline_mode<synchronous>, transform_indices = @transform_2, window_bounds = array<i64: 1, 2>}, {pipeline_mode = #tpu.pipeline_mode<synchronous>, transform_indices = @transform_3, window_bounds = array<i64: 2, 32>}, {pipeline_mode = #tpu.pipeline_mode<synchronous>, transform_indices = @transform_4, window_bounds = array<i64: 1, 32>}, {pipeline_mode = #tpu.pipeline_mode<synchronous>, transform_indices = @transform_5, window_bounds = array<i64: 32, 32>}, {pipeline_mode = #tpu.pipeline_mode<synchronous>, transform_indices = @transform_6, window_bounds = array<i64: 1, 32>}, {transform_indices = @transform_7, window_bounds = array<i64: 8, 32>}]} {
    %c0 = arith.constant 0 : index
    %c0_0 = arith.constant 0 : index
    %c0_1 = arith.constant 0 : index
    %0 = vector.load %arg1[%c0, %c0_0, %c0_1] : memref<1x8x32xf32, #tpu.memory_space<vmem>>, vector<1x8x32xf32>
    %cst = arith.constant dense<0.000000e+00> : vector<1x32xf32>
    %1 = vector.multi_reduction <add>, %0, %cst [1] : vector<1x8x32xf32> to vector<1x32xf32>
    %cst_2 = arith.constant 8.000000e+00 : f32
    %2 = vector.broadcast %cst_2 : f32 to vector<1x32xf32>
    %3 = arith.divf %1, %2 : vector<1x32xf32>
    %cst_3 = arith.constant 0.000000e+00 : f32
    %4 = vector.broadcast %cst_3 : f32 to vector<1x32xf32>
    %c0_4 = arith.constant 0 : index
    %c0_5 = arith.constant 0 : index
    %5 = vector.load %arg2[%c0_4, %c0_5] : memref<2x32xf32, #tpu.memory_space<vmem>>, vector<1x32xf32>
    %6 = arith.mulf %3, %5 : vector<1x32xf32>
    %cst_6 = arith.constant dense<0.000000e+00> : vector<1xf32>
    %7 = vector.multi_reduction <add>, %6, %cst_6 [1] : vector<1x32xf32> to vector<1xf32>
    %8 = vector.shape_cast %7 : vector<1xf32> to vector<1x1xf32>
    %c0_7 = arith.constant 0 : index
    %c0_8 = arith.constant 0 : index
    %9 = vector.load %arg3[%c0_7, %c0_8] : memref<1x2xf32, #tpu.memory_space<vmem>>, vector<1x1xf32>
    %10 = arith.addf %8, %9 : vector<1x1xf32>
    %cst_9 = arith.constant 0.000000e+00 : f32
    %11 = vector.broadcast %cst_9 : f32 to vector<1x1xf32>
    %12 = arith.maximumf %10, %11 : vector<1x1xf32>
    %c0_10 = arith.constant 0 : index
    %c0_11 = arith.constant 0 : index
    %13 = vector.load %arg4[%c0_10, %c0_11] : memref<2x32xf32, #tpu.memory_space<vmem>>, vector<1x32xf32>
    %14 = vector.broadcast %12 : vector<1x1xf32> to vector<1x32xf32>
    %15 = arith.mulf %14, %13 : vector<1x32xf32>
    %16 = arith.addf %4, %15 : vector<1x32xf32>
    %c1 = arith.constant 1 : index
    %c0_12 = arith.constant 0 : index
    %17 = vector.load %arg2[%c1, %c0_12] : memref<2x32xf32, #tpu.memory_space<vmem>>, vector<1x32xf32>
    %18 = arith.mulf %3, %17 : vector<1x32xf32>
    %cst_13 = arith.constant dense<0.000000e+00> : vector<1xf32>
    %19 = vector.multi_reduction <add>, %18, %cst_13 [1] : vector<1x32xf32> to vector<1xf32>
    %20 = vector.shape_cast %19 : vector<1xf32> to vector<1x1xf32>
    %c0_14 = arith.constant 0 : index
    %c1_15 = arith.constant 1 : index
    %21 = vector.load %arg3[%c0_14, %c1_15] : memref<1x2xf32, #tpu.memory_space<vmem>>, vector<1x1xf32>
    %22 = arith.addf %20, %21 : vector<1x1xf32>
    %cst_16 = arith.constant 0.000000e+00 : f32
    %23 = vector.broadcast %cst_16 : f32 to vector<1x1xf32>
    %24 = arith.maximumf %22, %23 : vector<1x1xf32>
    %c1_17 = arith.constant 1 : index
    %c0_18 = arith.constant 0 : index
    %25 = vector.load %arg4[%c1_17, %c0_18] : memref<2x32xf32, #tpu.memory_space<vmem>>, vector<1x32xf32>
    %26 = vector.broadcast %24 : vector<1x1xf32> to vector<1x32xf32>
    %27 = arith.mulf %26, %25 : vector<1x32xf32>
    %28 = arith.addf %16, %27 : vector<1x32xf32>
    %c0_19 = arith.constant 0 : index
    %c0_20 = arith.constant 0 : index
    %29 = vector.load %arg5[%c0_19, %c0_20] : memref<1x32xf32, #tpu.memory_space<vmem>>, vector<1x32xf32>
    %30 = arith.addf %28, %29 : vector<1x32xf32>
    %31 = arith.negf %30 : vector<1x32xf32>
    %32 = math.exp %31 : vector<1x32xf32>
    %cst_21 = arith.constant 1.000000e+00 : f32
    %33 = vector.broadcast %cst_21 : f32 to vector<1x32xf32>
    %34 = arith.addf %33, %32 : vector<1x32xf32>
    %35 = arith.divf %33, %34 : vector<1x32xf32>
    %36 = vector.shape_cast %35 : vector<1x32xf32> to vector<1x1x32xf32>
    %37 = vector.broadcast %36 : vector<1x1x32xf32> to vector<1x8x32xf32>
    %38 = arith.mulf %0, %37 : vector<1x8x32xf32>
    %39 = vector.shape_cast %38 : vector<1x8x32xf32> to vector<8x32xf32>
    %c0_22 = arith.constant 0 : index
    %c0_23 = arith.constant 0 : index
    %40 = vector.load %arg6[%c0_22, %c0_23] : memref<32x32xf32, #tpu.memory_space<vmem>>, vector<32x32xf32>
    %cst_24 = arith.constant dense<0.000000e+00> : vector<8x32xf32>
    %41 = tpu.matmul %39, %40, %cst_24 {dimension_numbers = #tpu.dot_dimension_numbers<[1], [0], [0], [1], [0, 0, 1, 1], [], []>} : vector<8x32xf32>, vector<32x32xf32>, vector<8x32xf32> -> vector<8x32xf32>
    %c0_25 = arith.constant 0 : index
    %c0_26 = arith.constant 0 : index
    %42 = vector.load %arg7[%c0_25, %c0_26] : memref<1x32xf32, #tpu.memory_space<vmem>>, vector<1x32xf32>
    %43 = vector.broadcast %42 : vector<1x32xf32> to vector<8x32xf32>
    %44 = arith.addf %41, %43 : vector<8x32xf32>
    %c0_27 = arith.constant 0 : index
    %c0_28 = arith.constant 0 : index
    %45 = vector.load %arg8[%c0_27, %c0_28] : memref<8x32xf32, #tpu.memory_space<vmem>>, vector<8x32xf32>
    tpu.vector_store %arg8[%c0_27, %c0_28], %44 {strides = array<i32>} : memref<8x32xf32, #tpu.memory_space<vmem>>, vector<8x32xf32>,
    return
  }
  func.func @transform_0(%arg0: i32) -> (i32, i32, i32) {
    %c0_i32 = arith.constant 0 : i32
    %c0_i32_0 = arith.constant 0 : i32
    %c0_i32_1 = arith.constant 0 : i32
    return %arg0, %c0_i32, %c0_i32_0 : i32, i32, i32
  }
  func.func @transform_1(%arg0: i32) -> (i32, i32) {
    %c0_i32 = arith.constant 0 : i32
    %c0_i32_0 = arith.constant 0 : i32
    %c0_i32_1 = arith.constant 0 : i32
    return %c0_i32, %c0_i32_0 : i32, i32
  }
  func.func @transform_2(%arg0: i32) -> (i32, i32) {
    %c0_i32 = arith.constant 0 : i32
    %c0_i32_0 = arith.constant 0 : i32
    %c0_i32_1 = arith.constant 0 : i32
    return %c0_i32, %c0_i32_0 : i32, i32
  }
  func.func @transform_3(%arg0: i32) -> (i32, i32) {
    %c0_i32 = arith.constant 0 : i32
    %c0_i32_0 = arith.constant 0 : i32
    %c0_i32_1 = arith.constant 0 : i32
    return %c0_i32, %c0_i32_0 : i32, i32
  }
  func.func @transform_4(%arg0: i32) -> (i32, i32) {
    %c0_i32 = arith.constant 0 : i32
    %c0_i32_0 = arith.constant 0 : i32
    %c0_i32_1 = arith.constant 0 : i32
    return %c0_i32, %c0_i32_0 : i32, i32
  }
  func.func @transform_5(%arg0: i32) -> (i32, i32) {
    %c0_i32 = arith.constant 0 : i32
    %c0_i32_0 = arith.constant 0 : i32
    %c0_i32_1 = arith.constant 0 : i32
    return %c0_i32, %c0_i32_0 : i32, i32
  }
  func.func @transform_6(%arg0: i32) -> (i32, i32) {
    %c0_i32 = arith.constant 0 : i32
    %c0_i32_0 = arith.constant 0 : i32
    %c0_i32_1 = arith.constant 0 : i32
    return %c0_i32, %c0_i32_0 : i32, i32
  }
  func.func @transform_7(%arg0: i32) -> (i32, i32) {
    %c0_i32 = arith.constant 0 : i32
    %c0_i32_0 = arith.constant 0 : i32
    return %arg0, %c0_i32 : i32, i32
  }
}

</mosaic_0001>

<llo_original>
// kernel: tpu_custom_call.1
$region0: #{tpu_custom_call.1}
  #allocation0 [shape = 'u32[]', space=smem, size = 0x4, offset = 0x4, fixed_abs, tag = 'smem constant byte address 0x4 - core index']
  #allocation1 [shape = 'u32[72,128]{1,0:T(1,128)}', space=vmem, size = 0x9000, scoped, tag = 'internal scratch']
  %s0 = inlined_call_operand.hbm [shape: f32[2,8,32], index: 0, kind: input, shape index: {}]
  %s1 = inlined_call_operand.hbm [shape: f32[2,32], index: 1, kind: input, shape index: {}]
  %s2 = inlined_call_operand.hbm [shape: f32[1,2], index: 2, kind: input, shape index: {}]
  %s3 = inlined_call_operand.vmem [shape: f32[2,32], index: 3, kind: input, shape index: {}]
  %s4 = inlined_call_operand.vmem [shape: f32[1,32], index: 4, kind: input, shape index: {}]
  %s5 = inlined_call_operand.hbm [shape: f32[32,32], index: 5, kind: input, shape index: {}]
  %s6 = inlined_call_operand.vmem [shape: f32[1,32], index: 6, kind: input, shape index: {}]
  %s7 = inlined_call_operand.hbm [shape: f32[16,32], index: 7, kind: output, shape index: {}]
  %s8 = sld [smem:[#allocation0]]
  $region77: #{tpu_custom_call.1} parent=0
    _
  %s10 = ssub.s32 1, %s8
  %s11 = scalar_select 0, %s10, %s8
  $region1: #{tpu_custom_call.1} parent=0
    #allocation2 [shape = 'u8[8192]{0}', space=vmem, size = 0x2000, scoped, tag = 'input window, operand 0']
    #allocation3 [shape = 's32[2]{0}', space=sflag, size = 0x8, scoped, tag = 'scoped memory for tpu_custom_call.1']
    #allocation4 [shape = 's32[2]{0}', space=sflag, size = 0x8, scoped, tag = 'scoped memory for tpu_custom_call.1']
    #allocation5 [shape = 'u8[1024]{0}', space=vmem, size = 0x400, scoped, tag = 'input window, operand 1, single buffered']
    #allocation6 [shape = 's32[1]{0}', space=sflag, size = 0x4, scoped, tag = 'scoped memory for tpu_custom_call.1']
    #allocation7 [shape = 'u8[512]{0}', space=vmem, size = 0x400, scoped, tag = 'input window, operand 2, single buffered']
    #allocation8 [shape = 'u8[16384]{0}', space=vmem, size = 0x4000, scoped, tag = 'input window, operand 5, single buffered']
    #allocation9 [shape = 's32[1]{0}', space=sflag, size = 0x4, scoped, tag = 'scoped memory for tpu_custom_call.1']
    #allocation10 [shape = 'u8[8192]{0}', space=vmem, size = 0x2000, scoped, tag = 'output window, operand 0']
    %12 = vsyncpa [#allocation3], 0
    %s13 = scalar_lea.sflag [#allocation3], 1
    %14 = vsyncpa %s13, 0
    %15 = vsyncpa [#allocation6], 0
    %16 = vsyncpa [#allocation9], 0
    %17 = vsyncpa [#allocation4], 0
    %s18 = scalar_lea.sflag [#allocation4], 1
    %19 = vsyncpa %s18, 0
    loop: start=0, step=1, limit=4
    $region2: #{tpu_custom_call.1} parent=1 // loop_pre_header
      _
    $region3: #{tpu_custom_call.1} parent=1 // loop_header
      %s21 = sphi 0, %s25
      %p22 = scmp.ge.s32.totalorder %s21, 4
      %s31 = sphi 0, %s33
      %s34 = sphi 0, %s31
      %s35 = sphi 0, %s34
      %s51 = sphi 0, %s35
      %s55 = sphi 0, %s55
      %s57 = sphi 0, %s55
      %s58 = sphi 0, %s57
      %s72 = sphi 0, %s58
      %s76 = sphi 0, %s76
      %s78 = sphi 0, %s76
      %s79 = sphi 0, %s78
      %s93 = sphi 0, %s79
      %s97 = sphi 0, %s97
      %s99 = sphi 0, %s97
      %s100 = sphi 0, %s99
      %s114 = sphi 0, %s100
      %s118 = sphi 0, %s118
      %s120 = sphi 0, %s118
      %s121 = sphi 0, %s120
      %s135 = sphi 0, %s121
      %s139 = sphi 0, %s139
      %s141 = sphi 0, %s139
      %s142 = sphi 0, %s141
      %s156 = sphi 0, %s142
      %s160 = sphi 0, %s160
      %s162 = sphi 0, %s160
      %s163 = sphi 0, %s162
      %s177 = sphi 0, %s163
      %s183 = sphi 0, %s185
      %s186 = sphi 0, %s183
      %s187 = sphi 0, %s186
      %s203 = sphi 0, %s187
    $region4: #{tpu_custom_call.1} parent=1 // loop_header_branch
      %24 = sbr.rel (%p22) target = $region8
    $region5: #{tpu_custom_call.1} parent=1 // loop_body
      %s26 = ssub.s32 %s21, 1
      %s27 = ssub.s32 %s21, 2
      %s28 = sadd.s32 %s21, 1
      %s29 = ssub.s32 %s21, %s28
      %p30 = scmp.eq.s32.totalorder %s29, 0
      %s32 = sadd.s32 %s31, 1
      %s33 = scalar_select %p30, %s31, %s32
      %p36 = pneg %p30
      %p37 = scmp.eq.s32.totalorder %s21, 1
      %p38 = por %p36, %p37
      %p39 = scmp.ne.s32.totalorder %s31, %s34
      %p40 = scmp.eq.s32.totalorder %s21, 0
      %p41 = por %p39, %p40
      %p42 = scmp.ne.s32.totalorder %s31, %s34
      %p43 = scmp.eq.s32.totalorder %s26, 1
      %p44 = por %p42, %p43
      %p45 = scmp.ne.s32.totalorder %s34, %s35
      %p46 = scmp.eq.s32.totalorder %s26, 0
      %p47 = por %p45, %p46
      %p48 = scmp.ne.s32.totalorder %s34, %s35
      %p49 = scmp.eq.s32.totalorder %s27, 1
      %p50 = por %p48, %p49
      %p52 = scmp.ne.s32.totalorder %s35, %s51
      %p53 = scmp.eq.s32.totalorder %s27, 0
      %p54 = por %p52, %p53
      %s56 = sadd.s32 %s55, 1
      %p59 = scmp.eq.s32.totalorder %s21, 1
      %p60 = scmp.ne.s32.totalorder %s55, %s57
      %p61 = scmp.eq.s32.totalorder %s21, 0
      %p62 = por %p60, %p61
      %p63 = scmp.ne.s32.totalorder %s55, %s57
      %p64 = scmp.eq.s32.totalorder %s26, 1
      %p65 = por %p63, %p64
      %p66 = scmp.ne.s32.totalorder %s57, %s58
      %p67 = scmp.eq.s32.totalorder %s26, 0
      %p68 = por %p66, %p67
      %p69 = scmp.ne.s32.totalorder %s57, %s58
      %p70 = scmp.eq.s32.totalorder %s27, 1
      %p71 = por %p69, %p70
      %p73 = scmp.ne.s32.totalorder %s58, %s72
      %p74 = scmp.eq.s32.totalorder %s27, 0
      %p75 = por %p73, %p74
      %s77 = sadd.s32 %s76, 1
      %p80 = scmp.eq.s32.totalorder %s21, 1
      %p81 = scmp.ne.s32.totalorder %s76, %s78
      %p82 = scmp.eq.s32.totalorder %s21, 0
      %p83 = por %p81, %p82
      %p84 = scmp.ne.s32.totalorder %s76, %s78
      %p85 = scmp.eq.s32.totalorder %s26, 1
      %p86 = por %p84, %p85
      %p87 = scmp.ne.s32.totalorder %s78, %s79
      %p88 = scmp.eq.s32.totalorder %s26, 0
      %p89 = por %p87, %p88
      %p90 = scmp.ne.s32.totalorder %s78, %s79
      %p91 = scmp.eq.s32.totalorder %s27, 1
      %p92 = por %p90, %p91
      %p94 = scmp.ne.s32.totalorder %s79, %s93
      %p95 = scmp.eq.s32.totalorder %s27, 0
      %p96 = por %p94, %p95
      %s98 = sadd.s32 %s97, 1
      %p101 = scmp.eq.s32.totalorder %s21, 1
      %p102 = scmp.ne.s32.totalorder %s97, %s99
      %p103 = scmp.eq.s32.totalorder %s21, 0
      %p104 = por %p102, %p103
      %p105 = scmp.ne.s32.totalorder %s97, %s99
      %p106 = scmp.eq.s32.totalorder %s26, 1
      %p107 = por %p105, %p106
      %p108 = scmp.ne.s32.totalorder %s99, %s100
      %p109 = scmp.eq.s32.totalorder %s26, 0
      %p110 = por %p108, %p109
      %p111 = scmp.ne.s32.totalorder %s99, %s100
      %p112 = scmp.eq.s32.totalorder %s27, 1
      %p113 = por %p111, %p112
      %p115 = scmp.ne.s32.totalorder %s100, %s114
      %p116 = scmp.eq.s32.totalorder %s27, 0
      %p117 = por %p115, %p116
      %s119 = sadd.s32 %s118, 1
      %p122 = scmp.eq.s32.totalorder %s21, 1
      %p123 = scmp.ne.s32.totalorder %s118, %s120
      %p124 = scmp.eq.s32.totalorder %s21, 0
      %p125 = por %p123, %p124
      %p126 = scmp.ne.s32.totalorder %s118, %s120
      %p127 = scmp.eq.s32.totalorder %s26, 1
      %p128 = por %p126, %p127
      %p129 = scmp.ne.s32.totalorder %s120, %s121
      %p130 = scmp.eq.s32.totalorder %s26, 0
      %p131 = por %p129, %p130
      %p132 = scmp.ne.s32.totalorder %s120, %s121
      %p133 = scmp.eq.s32.totalorder %s27, 1
      %p134 = por %p132, %p133
      %p136 = scmp.ne.s32.totalorder %s121, %s135
      %p137 = scmp.eq.s32.totalorder %s27, 0
      %p138 = por %p136, %p137
      %s140 = sadd.s32 %s139, 1
      %p143 = scmp.eq.s32.totalorder %s21, 1
      %p144 = scmp.ne.s32.totalorder %s139, %s141
      %p145 = scmp.eq.s32.totalorder %s21, 0
      %p146 = por %p144, %p145
      %p147 = scmp.ne.s32.totalorder %s139, %s141
      %p148 = scmp.eq.s32.totalorder %s26, 1
      %p149 = por %p147, %p148
      %p150 = scmp.ne.s32.totalorder %s141, %s142
      %p151 = scmp.eq.s32.totalorder %s26, 0
      %p152 = por %p150, %p151
      %p153 = scmp.ne.s32.totalorder %s141, %s142
      %p154 = scmp.eq.s32.totalorder %s27, 1
      %p155 = por %p153, %p154
      %p157 = scmp.ne.s32.totalorder %s142, %s156
      %p158 = scmp.eq.s32.totalorder %s27, 0
      %p159 = por %p157, %p158
      %s161 = sadd.s32 %s160, 1
      %p164 = scmp.eq.s32.totalorder %s21, 1
      %p165 = scmp.ne.s32.totalorder %s160, %s162
      %p166 = scmp.eq.s32.totalorder %s21, 0
      %p167 = por %p165, %p166
      %p168 = scmp.ne.s32.totalorder %s160, %s162
      %p169 = scmp.eq.s32.totalorder %s26, 1
      %p170 = por %p168, %p169
      %p171 = scmp.ne.s32.totalorder %s162, %s163
      %p172 = scmp.eq.s32.totalorder %s26, 0
      %p173 = por %p171, %p172
      %p174 = scmp.ne.s32.totalorder %s162, %s163
      %p175 = scmp.eq.s32.totalorder %s27, 1
      %p176 = por %p174, %p175
      %p178 = scmp.ne.s32.totalorder %s163, %s177
      %p179 = scmp.eq.s32.totalorder %s27, 0
      %p180 = por %p178, %p179
      %s181 = ssub.s32 %s21, %s28
      %p182 = scmp.eq.s32.totalorder %s181, 0
      %s184 = sadd.s32 %s183, 1
      %s185 = scalar_select %p182, %s183, %s184
      %p188 = pneg %p182
      %p189 = scmp.eq.s32.totalorder %s21, 1
      %p190 = por %p188, %p189
      %p191 = scmp.ne.s32.totalorder %s183, %s186
      %p192 = scmp.eq.s32.totalorder %s21, 0
      %p193 = por %p191, %p192
      %p194 = scmp.ne.s32.totalorder %s183, %s186
      %p195 = scmp.eq.s32.totalorder %s26, 1
      %p196 = por %p194, %p195
      %p197 = scmp.ne.s32.totalorder %s186, %s187
      %p198 = scmp.eq.s32.totalorder %s26, 0
      %p199 = por %p197, %p198
      %p200 = scmp.ne.s32.totalorder %s186, %s187
      %p201 = scmp.eq.s32.totalorder %s27, 1
      %p202 = por %p200, %p201
      %p204 = scmp.ne.s32.totalorder %s187, %s203
      %p205 = scmp.eq.s32.totalorder %s27, 0
      %p206 = por %p204, %p205
      %p207 = scmp.le.s32.totalorder 1, %s21
      %p208 = scmp.lt.s32.totalorder %s21, 3
      %p209 = pnand %p207, %p208
      %p210 = pneg %p209
      // Predicated region
      $region9: #{tpu_custom_call.1} parent=5 // pred_check
        _
      $region10: #{tpu_custom_call.1} parent=5 // pred_check_branch
        %212 = sbr.rel (%p209) target = $region12
      $region11: #{tpu_custom_call.1} parent=5 // pred_region
        %s213 = ssub.s32 %s21, 1
        // Predicated region
        $region13: #{tpu_custom_call.1} parent=11 // pred_check
          %p214 = pneg %p68
        $region14: #{tpu_custom_call.1} parent=11 // pred_check_branch
          %216 = sbr.rel (%p214) target = $region16
        $region15: #{tpu_custom_call.1} parent=11 // pred_region
          %218 = vsyncadd [#allocation6], 0
          %s220 = sshll.u32 %s1, 4
          %s221 = int_to_ptr.hbm [resolvable:$true] %s220
          %s222 = sshll.u32 [#allocation5], 4
          %s223 = int_to_ptr.vmem [resolvable:$true] %s222
          %225 = dma.hbm_to_vmem [thread:$0]  %s221, 32, %s223, [#allocation6]
        $region16: #{tpu_custom_call.1} parent=11 // pred_fallthru
          _
        // Predicated region
        $region17: #{tpu_custom_call.1} parent=11 // pred_check
          %p226 = pneg %p89
        $region18: #{tpu_custom_call.1} parent=11 // pred_check_branch
          %228 = sbr.rel (%p226) target = $region20
        $region19: #{tpu_custom_call.1} parent=11 // pred_region
          %230 = vsyncadd [#allocation6], 0
          %s232 = sshll.u32 %s2, 4
          %s233 = int_to_ptr.hbm [resolvable:$true] %s232
          %s234 = sshll.u32 [#allocation7], 4
          %s235 = int_to_ptr.vmem [resolvable:$true] %s234
          %237 = dma.hbm_to_vmem [thread:$0]  %s233, 16, %s235, [#allocation6]
        $region20: #{tpu_custom_call.1} parent=11 // pred_fallthru
          _
        // Predicated region
        $region21: #{tpu_custom_call.1} parent=11 // pred_check
          %p238 = pneg %p110
        $region22: #{tpu_custom_call.1} parent=11 // pred_check_branch
          %240 = sbr.rel (%p238) target = $region24
        $region23: #{tpu_custom_call.1} parent=11 // pred_region
          _
        $region24: #{tpu_custom_call.1} parent=11 // pred_fallthru
          _
        // Predicated region
        $region25: #{tpu_custom_call.1} parent=11 // pred_check
          %p241 = pneg %p131
        $region26: #{tpu_custom_call.1} parent=11 // pred_check_branch
          %243 = sbr.rel (%p241) target = $region28
        $region27: #{tpu_custom_call.1} parent=11 // pred_region
          _
        $region28: #{tpu_custom_call.1} parent=11 // pred_fallthru
          _
        // Predicated region
        $region29: #{tpu_custom_call.1} parent=11 // pred_check
          %p244 = pneg %p152
        $region30: #{tpu_custom_call.1} parent=11 // pred_check_branch
          %246 = sbr.rel (%p244) target = $region32
        $region31: #{tpu_custom_call.1} parent=11 // pred_region
          %248 = vsyncadd [#allocation9], 0
          %s249 = sshll.u32 %s5, 4
          %s250 = int_to_ptr.hbm [resolvable:$true] %s249
          %s251 = sshll.u32 [#allocation8], 4
          %s252 = int_to_ptr.vmem [resolvable:$true] %s251
          %257 = dma.hbm_to_vmem [thread:$0]  %s250, 512, %s252, [#allocation9], 128, 128, 8
        $region32: #{tpu_custom_call.1} parent=11 // pred_fallthru
          _
        // Predicated region
        $region33: #{tpu_custom_call.1} parent=11 // pred_check
          %p258 = pneg %p173
        $region34: #{tpu_custom_call.1} parent=11 // pred_check_branch
          %260 = sbr.rel (%p258) target = $region36
        $region35: #{tpu_custom_call.1} parent=11 // pred_region
          _
        $region36: #{tpu_custom_call.1} parent=11 // pred_fallthru
          _
      $region12: #{tpu_custom_call.1} parent=5 // pred_fallthru
        _
      %p261 = scmp.lt.s32.totalorder %s21, 2
      // Predicated region
      $region37: #{tpu_custom_call.1} parent=5 // pred_check
        %p262 = pneg %p261
      $region38: #{tpu_custom_call.1} parent=5 // pred_check_branch
        %264 = sbr.rel (%p262) target = $region40
      $region39: #{tpu_custom_call.1} parent=5 // pred_region
        // Predicated region
        $region41: #{tpu_custom_call.1} parent=39 // pred_check
          %p265 = pneg %p41
        $region42: #{tpu_custom_call.1} parent=39 // pred_check_branch
          %267 = sbr.rel (%p265) target = $region44
        $region43: #{tpu_custom_call.1} parent=39 // pred_region
          %s268 = sand.u32 %s31, 1
          %s269 = scalar_lea.sflag [#allocation3], %s268
          %s270 = sand.u32 %s31, 1
          %s271 = smul.addr %s270, 8
          %s272 = scalar_lea.vmem [#allocation2], %s271
          %274 = vsyncadd %s269, 0
          %s275 = smul.addr %s21, 8
          %s276 = scalar_lea.hbm %s0, %s275
          %s278 = sshll.u32 %s276, 4
          %s279 = int_to_ptr.hbm [resolvable:$true] %s278
          %s280 = sshll.u32 %s272, 4
          %s281 = int_to_ptr.vmem [resolvable:$true] %s280
          %283 = dma.hbm_to_vmem [thread:$0]  %s279, 128, %s281, %s269
        $region44: #{tpu_custom_call.1} parent=39 // pred_fallthru
          _
      $region40: #{tpu_custom_call.1} parent=5 // pred_fallthru
        _
      %p284 = scmp.le.s32.totalorder 1, %s21
      %p285 = scmp.lt.s32.totalorder %s21, 3
      %p286 = pnand %p284, %p285
      %p287 = pneg %p286
      // Predicated region
      $region45: #{tpu_custom_call.1} parent=5 // pred_check
        _
      $region46: #{tpu_custom_call.1} parent=5 // pred_check_branch
        %289 = sbr.rel (%p286) target = $region48
      $region47: #{tpu_custom_call.1} parent=5 // pred_region
        %s290 = ssub.s32 %s21, 1
        %s291 = sand.u32 %s34, 1
        %s292 = scalar_lea.sflag [#allocation3], %s291
        %s293 = sand.u32 %s34, 1
        %s294 = smul.addr %s293, 8
        %s295 = scalar_lea.vmem [#allocation2], %s294
        // Predicated region
        $region49: #{tpu_custom_call.1} parent=47 // pred_check
          %p296 = pneg %p47
        $region50: #{tpu_custom_call.1} parent=47 // pred_check_branch
          %298 = sbr.rel (%p296) target = $region52
        $region51: #{tpu_custom_call.1} parent=47 // pred_region
          %300 = dma.done %s292, 128
        $region52: #{tpu_custom_call.1} parent=47 // pred_fallthru
          _
        // Predicated region
        $region53: #{tpu_custom_call.1} parent=47 // pred_check
          %p301 = pneg %p68
        $region54: #{tpu_custom_call.1} parent=47 // pred_check_branch
          %303 = sbr.rel (%p301) target = $region56
        $region55: #{tpu_custom_call.1} parent=47 // pred_region
          %305 = dma.done [#allocation6], 32
        $region56: #{tpu_custom_call.1} parent=47 // pred_fallthru
          _
        // Predicated region
        $region57: #{tpu_custom_call.1} parent=47 // pred_check
          %p306 = pneg %p89
        $region58: #{tpu_custom_call.1} parent=47 // pred_check_branch
          %308 = sbr.rel (%p306) target = $region60
        $region59: #{tpu_custom_call.1} parent=47 // pred_region
          %310 = dma.done [#allocation6], 16
        $region60: #{tpu_custom_call.1} parent=47 // pred_fallthru
          _
        // Predicated region
        $region61: #{tpu_custom_call.1} parent=47 // pred_check
          %p311 = pneg %p152
        $region62: #{tpu_custom_call.1} parent=47 // pred_check_branch
          %313 = sbr.rel (%p311) target = $region64
        $region63: #{tpu_custom_call.1} parent=47 // pred_region
          %315 = dma.done [#allocation9], 512
        $region64: #{tpu_custom_call.1} parent=47 // pred_fallthru
          _
        %s316 = sand.u32 %s34, 1
        %s317 = scalar_lea.sflag [#allocation3], %s316
        %s318 = sand.u32 %s34, 1
        %s319 = smul.addr %s318, 8
        %s320 = scalar_lea.vmem [#allocation2], %s319
        %p321 = pneg %p47
        %p322 = pneg %p44
        %p323 = pneg %p68
        %p324 = pneg %p65
        %p325 = pneg %p89
        %p326 = pneg %p86
        %p327 = pneg %p110
        %p328 = pneg %p107
        %p329 = pneg %p131
        %p330 = pneg %p128
        %p331 = pneg %p152
        %p332 = pneg %p149
        %p333 = pneg %p173
        %p334 = pneg %p170
        %p335 = pneg %p199
        %p336 = pneg %p196
        %s337 = sand.u32 %s186, 1
        %s338 = scalar_lea.sflag [#allocation4], %s337
        %s339 = sand.u32 %s186, 1
        %s340 = smul.addr %s339, 8
        %s341 = scalar_lea.vmem [#allocation10], %s340
        %v342 = vld [vmem:[%s295] sm:$0xff]
        %vm343 = vcmask 261120
        %v344 = vsel %vm343, %v342, 0.0
        %v345 = vrot.slane %v344, 4
        %v346 = vadd.f32 %v344, %v345
        %v347 = vrot.slane %v346, 2
        %v348 = vadd.f32 %v346, %v347
        %v349 = vrot.slane %v348, 1
        %v350 = vadd.f32 %v348, %v349
        %v351 = vrcp.pop 8.0
        %v352 = vmul.f32 8.0, %v351
        %v353 = vsub.f32 1.0, %v352
        %v354 = vmul.f32 %v351, %v353
        %v355 = vadd.f32 %v351, %v354
        %vm356 = vweird.f32 %v351
        %v357 = vsel %vm356, %v351, %v355
        %v358 = vmul.f32 %v350, %v357
        %v359 = vld [vmem:[#allocation5] sm:$0x1]
        %v360 = vmul.f32 %v358, %v359
        %vm361 = vcmask 253952
        %v362 = vsel %vm361, %v360, 0.0
        %363 = vadd.xlane.f32.xlu0 %v362
        %v364 = vpop.xlane.xlu0 %363
        %v365 = vld [vmem:[#allocation7] sm:$0x1]
        %v366 = vadd.f32 %v364, %v365
        %v367 = vmax.f32 %v366, 0.0
        %v368 = vld [vmem:[%s3] sm:$0x1]
        %370 = vset.pattern.permute.xlu0 0
        %371 = vperm.xlu0 %370, %v367
        %v372 = vpop.permute.xlu0 %371
        %v374 = vmul.f32 %v372, %v368
        %v375 = vadd.f32 %v374, 0.0
        %v376 = vld [vmem:[#allocation5 + $0x1] sm:$0x1]
        %v377 = vmul.f32 %v358, %v376
        %v378 = vsel %vm361, %v377, 0.0
        %379 = vadd.xlane.f32.xlu0 %v378
        %v380 = vpop.xlane.xlu0 %379
        %v382 = vperm.slane %v365, 0
        %383 = vrot.lane.b32.xlu0 %v382, 127
        %v384 = vpop.permute.xlu0 %383
        %v386 = vadd.f32 %v380, %v384
        %v387 = vmax.f32 %v386, 0.0
        %v388 = vld [vmem:[%s3 + $0x1] sm:$0x1]
        %390 = vset.pattern.permute.xlu0 0
        %391 = vperm.xlu0 %390, %v387
        %v392 = vpop.permute.xlu0 %391
        %v394 = vmul.f32 %v392, %v388
        %v395 = vadd.f32 %v375, %v394
        %v396 = vld [vmem:[%s4] sm:$0x1]
        %v397 = vadd.f32 %v395, %v396
        %v398 = vxor.u32 %v397, 2147483648
        %v399 = vmul.f32 %v398, 1.442695
        %v400 = vpow.pop %v399
        %v401 = vadd.f32 %v400, 1.0
        %v402 = vrcp.pop %v401
        %v403 = vmul.f32 %v401, %v402
        %v404 = vsub.f32 1.0, %v403
        %v405 = vmul.f32 %v402, %v404
        %v406 = vadd.f32 %v402, %v405
        %vm407 = vweird.f32 %v401
        %vm408 = vweird.f32 %v402
        %vm409 = vmor %vm407, %vm408
        %v410 = vsel %vm409, %v402, %v406
        %v411 = vand.u32 2147483647, %v401
        %vm412 = vcmp.eq.f32.partialorder %v411, 8.507059e+37
        %v413 = vand.u32 %v401, 2147483648
        %v414 = vor.u32 1.1754944e-38, %v413
        %v415 = vsel %vm412, %v414, %v410
        %v416 = vmul.f32 1.0, %v415
        %v417 = vperm.slane %v416, 0
        %v418 = vmul.f32 %v342, %v417
        %v419 = vld [vmem:[#allocation8] sm:$0xff]
        %v420 = vld [vmem:[#allocation8 + $0x8] sm:$0xff]
        %v421 = vld [vmem:[#allocation8 + $0x10] sm:$0xff]
        %v422 = vld [vmem:[#allocation8 + $0x18] sm:$0xff]
        %v423 = vld [vmem:[%s6] sm:$0x1]
        %v425 = vperm.slane %v423, 0
        %v428 = vsel %vm343, %v418, 0
        %430 = vmatpush.msra.mxu0 0.0
        %431 = vmatpush.msra.mxu0 0.0
        %432 = vmatpush.msra.mxu0 0.0
        %433 = vmatpush.msra.mxu0 0.0
        %434 = vmatpush.msra.mxu0 0.0
        %435 = vmatpush.msra.mxu0 0.0
        %436 = vmatpush.msra.mxu0 0.0
        %437 = vmatpush.msra.mxu0 0.0
        %438 = vmatpush.msra.mxu0 0.0
        %439 = vmatpush.msra.mxu0 0.0
        %440 = vmatpush.msra.mxu0 0.0
        %441 = vmatpush.msra.mxu0 0.0
        %442 = vmatpush.msra.mxu0 %v422
        %443 = vmatpush.msra.mxu0 %v421
        %444 = vmatpush.msra.mxu0 %v420
        %445 = vmatpush.msra.mxu0 %v419
        %446 = vmatmul.f32.gmra.mxu0 %v428
        %v447 = vpop.f32.mrf.mxu0
        %v448 = vadd.f32 %v425, %v447
        %449 = vdwg.mxu0
        %450 = vst.msk [vmem:[%s341] sm:$0xff] %vm343, %v448
        %s451 = sand.u32 %s186, 1
        %s452 = scalar_lea.sflag [#allocation4], %s451
        %s453 = sand.u32 %s186, 1
        %s454 = smul.addr %s453, 8
        %s455 = scalar_lea.vmem [#allocation10], %s454
        // Predicated region
        $region65: #{tpu_custom_call.1} parent=47 // pred_check
          %p456 = pneg %p196
        $region66: #{tpu_custom_call.1} parent=47 // pred_check_branch
          %458 = sbr.rel (%p456) target = $region68
        $region67: #{tpu_custom_call.1} parent=47 // pred_region
          %460 = vsyncadd %s452, 0
          %s461 = smul.addr %s26, 8
          %s462 = scalar_lea.hbm %s7, %s461
          %s464 = sshll.u32 %s455, 4
          %s465 = int_to_ptr.vmem [resolvable:$true] %s464
          %s466 = sshll.u32 %s462, 4
          %s467 = int_to_ptr.hbm [resolvable:$true] %s466
          %469 = dma.vmem_to_hbm [thread:$0]  %s465, 128, %s467, %s452
        $region68: #{tpu_custom_call.1} parent=47 // pred_fallthru
          _
      $region48: #{tpu_custom_call.1} parent=5 // pred_fallthru
        _
      %p470 = scmp.le.s32.totalorder 2, %s21
      // Predicated region
      $region69: #{tpu_custom_call.1} parent=5 // pred_check
        %p471 = pneg %p470
      $region70: #{tpu_custom_call.1} parent=5 // pred_check_branch
        %473 = sbr.rel (%p471) target = $region72
      $region71: #{tpu_custom_call.1} parent=5 // pred_region
        %s474 = ssub.s32 %s21, 2
        // Predicated region
        $region73: #{tpu_custom_call.1} parent=71 // pred_check
          %p475 = pneg %p202
        $region74: #{tpu_custom_call.1} parent=71 // pred_check_branch
          %477 = sbr.rel (%p475) target = $region76
        $region75: #{tpu_custom_call.1} parent=71 // pred_region
          %s478 = sand.u32 %s187, 1
          %s479 = scalar_lea.sflag [#allocation4], %s478
          %s480 = sand.u32 %s187, 1
          %s481 = smul.addr %s480, 8
          %s482 = scalar_lea.vmem [#allocation10], %s481
          %484 = dma.done %s479, 128
        $region76: #{tpu_custom_call.1} parent=71 // pred_fallthru
          _
      $region72: #{tpu_custom_call.1} parent=5 // pred_fallthru
        _
    $region6: #{tpu_custom_call.1} parent=1 // loop_footer
      %s25 = sadd.s32 1, %s21
    $region7: #{tpu_custom_call.1} parent=1 // loop_footer_branch
      %20 = sbr.rel target = $region3
    $region8: #{tpu_custom_call.1} parent=1 // loop_exit
      _
    %485 = vsyncpa [#allocation3], 1
    %s486 = scalar_lea.sflag [#allocation3], 1
    %487 = vsyncpa %s486, 1
    %488 = vsyncpa [#allocation6], 1
    %489 = vsyncpa [#allocation9], 1
    %490 = vsyncpa [#allocation4], 1
    %s491 = scalar_lea.sflag [#allocation4], 1
    %492 = vsyncpa %s491, 1

</llo_original>
